<compile_context>
chip_gen: v6e
topology: v6e:2x2x1
jax: 0.10.0
libtpu: 0.0.40
codegen_flags: <defaults>
</compile_context>

<pallas_src>
import functools

import jax
import jax.numpy as jnp
from jax import lax
from jax.experimental import pallas as pl
from jax.experimental.pallas import tpu as pltpu


_DEFAULT_VMEM_BYTES = 64 * 1024 * 1024  # v7x per-TC physical; safe lower bound.


def _detect_vmem_bytes():
    """Best-effort VMEM capacity query with a conservative fallback."""
    try:
        info = pltpu.get_tpu_info()
        v = int(getattr(info, "vmem_capacity_bytes", 0) or 0)
        if v > 0:
            return v
    except Exception:
        pass
    return _DEFAULT_VMEM_BYTES


def _detect_num_tensorcores():
    """Best-effort TensorCores-per-chip count (1 on v5e/v6e, 2 on v7x)."""
    try:
        info = pltpu.get_tpu_info()
        for name in ("num_cores", "core_count", "tensorcore_count",
                     "num_tensorcores", "cores_per_chip"):
            v = getattr(info, name, None)
            if isinstance(v, int) and 1 <= v <= 8:
                return v
    except Exception:
        pass
    try:
        d = jax.devices()[0]
        kind = str(getattr(d, "device_kind", "")).lower()
        if "v7" in kind:
            return 2
        nc = getattr(d, "num_cores", None)
        if isinstance(nc, int) and 1 <= nc <= 8:
            return nc
    except Exception:
        pass
    return 1


def _pick_tm(n_arr, c_pad, itemsize, vmem_limit_bytes):
    """Largest row tile whose double-buffered pipeline + f32 temps fit VMEM."""
    budget = int(vmem_limit_bytes * 0.55)
    bytes_per_row = (
        2 * c_pad * itemsize   # logits tile, double-buffered (HBM <-> VMEM)
        + 3 * c_pad * 4        # in-kernel f32 temporaries: upcast/shifted/exp
        + 2 * 128 * 4          # (tm, 1) f32 target-logit tile (lane padded), 2 bufs
        + 128 * 4              # (tm, 1) f32 accumulator (lane padded)
    )
    tm = budget // bytes_per_row
    # Bytes-per-step target: keep each streamed logits block around 2-8 MiB so
    # the ~0.35us per-step pipeline overhead is negligible vs. the DMA time,
    # without over-growing the block (the old 2048-row cap gave only 512 KiB
    # per step at C=128 bf16, wasting 30-40% of achievable HBM bandwidth).
    max_step_bytes = 8 * 1024 * 1024
    tm = min(tm, max(8, max_step_bytes // max(1, c_pad * itemsize)))
    tm = int(max(8, tm))
    tm = min(tm, max(8, (n_arr // 8) * 8))   # never exceed the aligned batch
    if itemsize == 2 and tm >= 16:
        tm -= tm % 16                        # keep bf16 sublane packing aligned
    else:
        tm -= tm % 8
    return max(tm, 8)


def _label_smooth_kernel(x_ref, tgt_ref, out_ref, acc_ref, *,
                         smoothing, n_valid, tm, tiles_per_part):
    p = pl.program_id(0)          # partition (TensorCore split on v7x)
    j = pl.program_id(1)          # row-tile reduction step within the partition
    nj = pl.num_programs(1)

    @pl.when(j == 0)
    def _():
        acc_ref[...] = jnp.zeros_like(acc_ref)

    x = x_ref[...].astype(jnp.float32)     # (tm, C)  (bf16 upcast in-register)
    C = x.shape[-1]

    # Numerically-stable per-row pieces. No (tm, C) weight / log_prob tile is
    # materialized: since sum(weight) == 1,
    #   row_loss = lse - off*sum_j(shifted_j) - (on - off)*shifted[target]
    m = jnp.max(x, axis=-1, keepdims=True)                              # (tm, 1)
    shifted = x - m                                                     # (tm, C)
    lse = jnp.log(jnp.sum(jnp.exp(shifted), axis=-1, keepdims=True))    # (tm, 1)
    # Target term comes from the wrapper-side gather (no iota/compare/select).
    s_tgt = tgt_ref[...] - m                                            # (tm, 1)

    off = smoothing / (C - 1.0)
    on = 1.0 - smoothing
    if smoothing == 0.0:
        # Fast path (plain cross-entropy): skip the full-width sum of `shifted`.
        row_loss = lse - s_tgt
    else:
        s_sum = jnp.sum(shifted, axis=-1, keepdims=True)                # (tm, 1)
        row_loss = lse - jnp.float32(off) * s_sum - jnp.float32(on - off) * s_tgt

    # Rows past the true batch (ragged tail / clamped duplicate tile on a
    # trailing partition) come from an out-of-bounds block window and may hold
    # garbage (possibly NaN/Inf). The where() below discards them BEFORE they
    # reach the accumulator -- do not fold this mask into the accumulate.
    global_tile = p * tiles_per_part + j
    row_idx = global_tile * tm + lax.broadcasted_iota(jnp.int32, (tm, 1), 0)
    valid = row_idx < n_valid
    acc_ref[...] += jnp.where(valid, row_loss, 0.0)

    @pl.when(j == nj - 1)
    def _():
        # One cross-sublane reduce per partition, written lane-dense.
        out_ref[...] = jnp.full(out_ref.shape, jnp.sum(acc_ref[...]),
                                dtype=out_ref.dtype)


def label_smooth_loss(logits, target, smoothing=0.0, *, tm=None,
                      num_partitions=None):
    """logits: (N, C) float (f32 or bf16); target: (N,) int. Scalar f32 loss."""
    N, C = logits.shape
    assert C >= 2, "LabelSmoothLoss needs at least 2 classes (divides by C-1)"
    itemsize = jnp.dtype(logits.dtype).itemsize
    c_pad = ((C + 127) // 128) * 128

    # Pad tiny batches up to one sublane tile so block_shape <= array shape.
    n_arr = N
    if N < 8:
        pad = 8 - N
        logits = jnp.pad(logits, ((0, pad), (0, 0)))
        target = jnp.pad(target, ((0, pad),))
        n_arr = 8

    # Wrapper-side gather of the per-row target logit (N elements only). The
    # int target never enters the kernel.
    tgt_idx = target.astype(jnp.int32).reshape(n_arr, 1)
    tgt_logit = jnp.take_along_axis(logits, tgt_idx, axis=-1).astype(jnp.float32)

    vmem_cap = _detect_vmem_bytes()
    vmem_limit = min(int(vmem_cap * 0.75), 96 * 1024 * 1024)
    if tm is None:
        tm = _pick_tm(n_arr, c_pad, itemsize, vmem_limit)
    tm = max(8, min(int(tm), (n_arr // 8) * 8))
    tm -= tm % 8

    n_tiles = (n_arr + tm - 1) // tm
    if num_partitions is None:
        num_partitions = _detect_num_tensorcores()
    P = max(1, min(int(num_partitions), n_tiles))
    tiles_per_part = (n_tiles + P - 1) // P

    kernel = functools.partial(
        _label_smooth_kernel,
        smoothing=float(smoothing),
        n_valid=N,
        tm=tm,
        tiles_per_part=tiles_per_part,
    )

    def tile_map(p, j):
        # Clamp: trailing partitions may have fewer real tiles; their extra
        # steps re-read the last tile and are fully masked in the kernel.
        return (jnp.minimum(p * tiles_per_part + j, n_tiles - 1), 0)

    # HBM-streaming dominated cost; lets XLA schedule/overlap around the call.
    cost = pl.CostEstimate(
        flops=int(5 * N * C),
        transcendentals=int(N * C + N),
        bytes_accessed=int(N * C * itemsize + N * 4 + P * 8 * 128 * 4),
    )

    partials = pl.pallas_call(
        kernel,
        out_shape=jax.ShapeDtypeStruct((P, 8, 128), jnp.float32),
        grid_spec=pltpu.PrefetchScalarGridSpec(
            num_scalar_prefetch=0,
            grid=(P, tiles_per_part),
            in_specs=[
                pl.BlockSpec((tm, C), tile_map),   # C == full class dim (lanes)
                pl.BlockSpec((tm, 1), tile_map),   # gathered target logit
            ],
            out_specs=pl.BlockSpec((1, 8, 128), lambda p, j: (p, 0, 0)),
            scratch_shapes=[pltpu.VMEM((tm, 1), jnp.float32)],
        ),
        compiler_params=pltpu.CompilerParams(
            # partition axis parallel (both TCs on v7x), row reduction arbitrary
            dimension_semantics=("parallel", "arbitrary"),
            vmem_limit_bytes=vmem_limit,
        ),
        cost_estimate=cost,
    )(logits, tgt_logit)

    # Final cross-partition add + divide by the true batch size.
    return partials[:, 0, 0].sum() / jnp.float32(N)


def _reference(logits, target, smoothing):
    # Plain-JAX reference matching the PyTorch forward.
    x = logits.astype(jnp.float32)
    N, C = x.shape
    log_prob = jax.nn.log_softmax(x, axis=-1)
    weight = jnp.full((N, C), smoothing / (C - 1.0), dtype=jnp.float32)
    weight = weight.at[jnp.arange(N), target].set(1.0 - smoothing)
    return jnp.mean(jnp.sum(-weight * log_prob, axis=-1))


if __name__ == "__main__":
    key = jax.random.PRNGKey(0)
    k1, k2, k3, k4, k5, k6 = jax.random.split(key, 6)

    # Test 1: f32 logits, batch a multiple of the sublane tile, smoothing > 0.
    N1, C1, sm1 = 16, 128, 0.1
    logits1 = jax.random.normal(k1, (N1, C1), dtype=jnp.float32)
    target1 = jax.random.randint(k2, (N1,), 0, C1, dtype=jnp.int32)
    loss1 = jax.block_until_ready(label_smooth_loss(logits1, target1, smoothing=sm1))
    ref1 = _reference(logits1, target1, sm1)
    assert jnp.allclose(loss1, ref1, rtol=1e-4, atol=1e-4), (loss1, ref1)

    # Test 2: bf16 logits streamed as bf16, ragged batch (tail masking), and
    # C not a multiple of 128 (lane padding must not contaminate max/logsumexp).
    N2, C2, sm2 = 21, 100, 0.2
    logits2 = jax.random.normal(k3, (N2, C2), dtype=jnp.float32).astype(jnp.bfloat16)
    target2 = jax.random.randint(k4, (N2,), 0, C2, dtype=jnp.int32)
    loss2 = jax.block_until_ready(label_smooth_loss(logits2, target2, smoothing=sm2))
    ref2 = _reference(logits2, target2, sm2)
    assert jnp.allclose(loss2, ref2, rtol=2e-3, atol=2e-3), (loss2, ref2)

    # Test 3: smoothing == 0 fast path (plain cross-entropy), tiny batch < 8.
    N3, C3, sm3 = 5, 32, 0.0
    logits3 = jax.random.normal(k5, (N3, C3), dtype=jnp.float32)
    target3 = jax.random.randint(k6, (N3,), 0, C3, dtype=jnp.int32)
    loss3 = jax.block_until_ready(label_smooth_loss(logits3, target3, smoothing=sm3))
    ref3 = _reference(logits3, target3, sm3)
    assert jnp.allclose(loss3, ref3, rtol=1e-4, atol=1e-4), (loss3, ref3)

    print("KERNEL_OK")
</pallas_src>

<mosaic_0001>
module attributes {stable_mosaic.version = 11 : i64} {
  func.func @_label_smooth_kernel(%arg0: i32, %arg1: i32, %arg2: memref<16x128xf32, #tpu.memory_space<vmem>>, %arg3: memref<16x1xf32, #tpu.memory_space<vmem>>, %arg4: memref<1x8x128xf32, #tpu.memory_space<vmem>>, %arg5: memref<16x1xf32, #tpu.memory_space<vmem>>) attributes {dimension_semantics = [#tpu.dimension_semantics<parallel>, #tpu.dimension_semantics<arbitrary>], iteration_bounds = array<i64: 1, 1>, scalar_prefetch = 0 : i64, scratch_operands = 1 : i64, tpu.core_type = #tpu.core_type<tc>, window_params = [{transform_indices = @transform_0, window_bounds = array<i64: 16, 128>}, {transform_indices = @transform_1, window_bounds = array<i64: 16, 1>}, {transform_indices = @transform_2, window_bounds = array<i64: 1, 8, 128>}]} {
    %c0_i32 = arith.constant 0 : i32
    %0 = arith.cmpi eq, %arg1, %c0_i32 : i32
    %1 = arith.extui %0 : i1 to i32
    %c0_i32_0 = arith.constant 0 : i32
    %2 = arith.cmpi ne, %1, %c0_i32_0 : i32
    scf.if %2 {
      %cst_16 = arith.constant 0.000000e+00 : f32
      %38 = vector.broadcast %cst_16 : f32 to vector<16x1xf32>
      %c0_17 = arith.constant 0 : index
      %c0_18 = arith.constant 0 : index
      %39 = vector.load %arg5[%c0_17, %c0_18] : memref<16x1xf32, #tpu.memory_space<vmem>>, vector<16x1xf32>
      tpu.vector_store %arg5[%c0_17, %c0_18], %38 {strides = array<i32>} : memref<16x1xf32, #tpu.memory_space<vmem>>, vector<16x1xf32>,
    } else {
    }
    %c0 = arith.constant 0 : index
    %c0_1 = arith.constant 0 : index
    %3 = vector.load %arg2[%c0, %c0_1] : memref<16x128xf32, #tpu.memory_space<vmem>>, vector<16x128xf32>
    %cst = arith.constant dense<0xFF800000> : vector<16xf32>
    %4 = vector.multi_reduction <maximumf>, %3, %cst [1] : vector<16x128xf32> to vector<16xf32>
    %5 = vector.shape_cast %4 : vector<16xf32> to vector<16x1xf32>
    %6 = vector.broadcast %5 : vector<16x1xf32> to vector<16x128xf32>
    %7 = arith.subf %3, %6 : vector<16x128xf32>
    %8 = math.exp %7 : vector<16x128xf32>
    %cst_2 = arith.constant dense<0.000000e+00> : vector<16xf32>
    %9 = vector.multi_reduction <add>, %8, %cst_2 [1] : vector<16x128xf32> to vector<16xf32>
    %10 = vector.shape_cast %9 : vector<16xf32> to vector<16x1xf32>
    %11 = math.log %10 : vector<16x1xf32>
    %c0_3 = arith.constant 0 : index
    %c0_4 = arith.constant 0 : index
    %12 = vector.load %arg3[%c0_3, %c0_4] : memref<16x1xf32, #tpu.memory_space<vmem>>, vector<16x1xf32>
    %13 = arith.subf %12, %5 : vector<16x1xf32>
    %cst_5 = arith.constant dense<0.000000e+00> : vector<16xf32>
    %14 = vector.multi_reduction <add>, %7, %cst_5 [1] : vector<16x128xf32> to vector<16xf32>
    %15 = vector.shape_cast %14 : vector<16xf32> to vector<16x1xf32>
    %cst_6 = arith.constant 7.87401571E-4 : f32
    %16 = vector.broadcast %cst_6 : f32 to vector<16x1xf32>
    %17 = arith.mulf %16, %15 : vector<16x1xf32>
    %18 = arith.subf %11, %17 : vector<16x1xf32>
    %cst_7 = arith.constant 0.899212599 : f32
    %19 = vector.broadcast %cst_7 : f32 to vector<16x1xf32>
    %20 = arith.mulf %19, %13 : vector<16x1xf32>
    %21 = arith.subf %18, %20 : vector<16x1xf32>
    %c1_i32 = arith.constant 1 : i32
    %22 = arith.muli %arg0, %c1_i32 : i32
    %23 = arith.addi %22, %arg1 : i32
    %c16_i32 = arith.constant 16 : i32
    %24 = arith.muli %23, %c16_i32 : i32
    %25 = tpu.iota {dimensions = array<i32: 0>} : vector<16x1xi32>
    %26 = vector.broadcast %24 : i32 to vector<16x1xi32>
    %27 = arith.addi %26, %25 : vector<16x1xi32>
    %c16_i32_8 = arith.constant 16 : i32
    %28 = vector.broadcast %c16_i32_8 : i32 to vector<16x1xi32>
    %29 = arith.cmpi slt, %27, %28 : vector<16x1xi32>
    %c0_9 = arith.constant 0 : index
    %c0_10 = arith.constant 0 : index
    %30 = vector.load %arg5[%c0_9, %c0_10] : memref<16x1xf32, #tpu.memory_space<vmem>>, vector<16x1xf32>
    %cst_11 = arith.constant 0.000000e+00 : f32
    %31 = vector.broadcast %cst_11 : f32 to vector<16x1xf32>
    %32 = arith.select %29, %21, %31 : vector<16x1xi1>, vector<16x1xf32>
    %33 = arith.addf %30, %32 : vector<16x1xf32>
    %c0_12 = arith.constant 0 : index
    %c0_13 = arith.constant 0 : index
    %34 = vector.load %arg5[%c0_12, %c0_13] : memref<16x1xf32, #tpu.memory_space<vmem>>, vector<16x1xf32>
    tpu.vector_store %arg5[%c0_12, %c0_13], %33 {strides = array<i32>} : memref<16x1xf32, #tpu.memory_space<vmem>>, vector<16x1xf32>,
    %c0_i32_14 = arith.constant 0 : i32
    %35 = arith.cmpi eq, %arg1, %c0_i32_14 : i32
    %36 = arith.extui %35 : i1 to i32
    %c0_i32_15 = arith.constant 0 : i32
    %37 = arith.cmpi ne, %36, %c0_i32_15 : i32
    scf.if %37 {
      %c0_16 = arith.constant 0 : index
      %c0_17 = arith.constant 0 : index
      %38 = vector.load %arg5[%c0_16, %c0_17] : memref<16x1xf32, #tpu.memory_space<vmem>>, vector<16x1xf32>
      %39 = vector.shape_cast %38 : vector<16x1xf32> to vector<1x16x1xf32>
      %cst_18 = arith.constant dense<0.000000e+00> : vector<1xf32>
      %40 = vector.multi_reduction <add>, %39, %cst_18 [1, 2] : vector<1x16x1xf32> to vector<1xf32>
      %41 = vector.shape_cast %40 : vector<1xf32> to vector<1x1x1xf32>
      %42 = vector.extract %41[0, 0, 0] : f32 from vector<1x1x1xf32>
      %43 = vector.broadcast %42 : f32 to vector<1x8x128xf32>
      %c0_19 = arith.constant 0 : index
      %c0_20 = arith.constant 0 : index
      %c0_21 = arith.constant 0 : index
      %44 = vector.load %arg4[%c0_19, %c0_20, %c0_21] : memref<1x8x128xf32, #tpu.memory_space<vmem>>, vector<1x8x128xf32>
      tpu.vector_store %arg4[%c0_19, %c0_20, %c0_21], %43 {strides = array<i32>} : memref<1x8x128xf32, #tpu.memory_space<vmem>>, vector<1x8x128xf32>,
    } else {
    }
    return
  }
  func.func @transform_0(%arg0: i32, %arg1: i32) -> (i32, i32) {
    %c1_i32 = arith.constant 1 : i32
    %0 = arith.muli %arg0, %c1_i32 : i32
    %1 = arith.addi %0, %arg1 : i32
    %c0_i32 = arith.constant 0 : i32
    %2 = arith.minsi %1, %c0_i32 : i32
    %c0_i32_0 = arith.constant 0 : i32
    %c0_i32_1 = arith.constant 0 : i32
    return %2, %c0_i32_0 : i32, i32
  }
  func.func @transform_1(%arg0: i32, %arg1: i32) -> (i32, i32) {
    %c1_i32 = arith.constant 1 : i32
    %0 = arith.muli %arg0, %c1_i32 : i32
    %1 = arith.addi %0, %arg1 : i32
    %c0_i32 = arith.constant 0 : i32
    %2 = arith.minsi %1, %c0_i32 : i32
    %c0_i32_0 = arith.constant 0 : i32
    %c0_i32_1 = arith.constant 0 : i32
    return %2, %c0_i32_0 : i32, i32
  }
  func.func @transform_2(%arg0: i32, %arg1: i32) -> (i32, i32, i32) {
    %c0_i32 = arith.constant 0 : i32
    %c0_i32_0 = arith.constant 0 : i32
    %c0_i32_1 = arith.constant 0 : i32
    return %arg0, %c0_i32, %c0_i32_0 : i32, i32, i32
  }
}

</mosaic_0001>

<llo_original>
// kernel: tpu_custom_call.1
$region0: #{tpu_custom_call.1}
  #allocation0 [shape = 'u32[]', space=smem, size = 0x4, offset = 0x4, fixed_abs, tag = 'smem constant byte address 0x4 - core index']
  #allocation1 [shape = 'u32[144,128]{1,0:T(1,128)}', space=vmem, size = 0x12000, scoped, tag = 'internal scratch']
  #allocation2 [shape = 'f32[16,1]{1,0:T(8,128)}', space=vmem, size = 0x2000, scoped, tag = 'scratch operand']
  %s0 = inlined_call_operand.vmem [shape: f32[16,128], index: 0, kind: input, shape index: {}]
  %s1 = inlined_call_operand.vmem [shape: f32[16,1], index: 1, kind: input, shape index: {}]
  %s2 = inlined_call_operand.hbm [shape: f32[1,8,128], index: 2, kind: output, shape index: {}]
  %s3 = sld [smem:[#allocation0]]
  $region26: #{tpu_custom_call.1} parent=0
    _
  %s5 = ssub.s32 1, %s3
  %s6 = scalar_select 0, %s5, %s3
  $region1: #{tpu_custom_call.1} parent=0
    #allocation3 [shape = 'u8[4096]{0}', space=vmem, size = 0x1000, scoped, tag = 'output window, operand 0, single buffered']
    #allocation4 [shape = 's32[1]{0}', space=sflag, size = 0x4, scoped, tag = 'scoped memory for tpu_custom_call.1']
    %7 = vsyncpa [#allocation4], 0
    // Predicated region
    $region2: #{tpu_custom_call.1} parent=1 // pred_check
      _
    $region3: #{tpu_custom_call.1} parent=1 // pred_check_branch
      %9 = sbr.rel (0) target = $region5
    $region4: #{tpu_custom_call.1} parent=1 // pred_region
      %s10 = sadd.s32 0, 0
      %p11 = scmp.lt.s32.totalorder %s10, 0
      %s12 = scalar_select %p11, %s10, 0
      %s13 = smul.u32 2, %s12
      %p14 = scmp.lt.s32.totalorder %s13, 1
      %s15 = scalar_select %p14, %s13, 1
      %s16 = smul.addr %s15, 8
      %s17 = scalar_lea.vmem %s0, %s16
      %s18 = sadd.s32 0, 0
      %p19 = scmp.lt.s32.totalorder %s18, 0
      %s20 = scalar_select %p19, %s18, 0
      %s21 = smul.u32 2, %s20
    $region5: #{tpu_custom_call.1} parent=1 // pred_fallthru
      _
    // Predicated region
    $region6: #{tpu_custom_call.1} parent=1 // pred_check
      _
    $region7: #{tpu_custom_call.1} parent=1 // pred_check_branch
      %23 = sbr.rel (0) target = $region9
    $region8: #{tpu_custom_call.1} parent=1 // pred_region
      %s24 = sadd.s32 0, 0
      %p25 = scmp.lt.s32.totalorder %s24, 0
      %s26 = scalar_select %p25, %s24, 0
      %s27 = smul.u32 2, %s26
      %p28 = scmp.lt.s32.totalorder %s27, 1
      %s29 = scalar_select %p28, %s27, 1
      %s30 = smul.addr %s29, 8
      %s31 = scalar_lea.vmem %s1, %s30
      %s32 = sadd.s32 0, 0
      %p33 = scmp.lt.s32.totalorder %s32, 0
      %s34 = scalar_select %p33, %s32, 0
      %s35 = smul.u32 2, %s34
    $region9: #{tpu_custom_call.1} parent=1 // pred_fallthru
      _
    %s36 = sadd.s32 0, 0
    %p37 = scmp.lt.s32.totalorder %s36, 0
    %s38 = scalar_select %p37, %s36, 0
    %s39 = smul.u32 2, %s38
    %p40 = scmp.lt.s32.totalorder %s39, 1
    %s41 = scalar_select %p40, %s39, 1
    %s42 = smul.addr %s41, 8
    %s43 = scalar_lea.vmem %s0, %s42
    %s44 = sadd.s32 0, 0
    %p45 = scmp.lt.s32.totalorder %s44, 0
    %s46 = scalar_select %p45, %s44, 0
    %s47 = smul.u32 2, %s46
    %p48 = scmp.lt.s32.totalorder %s47, 1
    %s49 = scalar_select %p48, %s47, 1
    %s50 = smul.addr %s49, 8
    %s51 = scalar_lea.vmem %s1, %s50
    %s52 = sadd.s32 0, 0
    %p53 = scmp.lt.s32.totalorder %s52, 0
    %s54 = scalar_select %p53, %s52, 0
    %s55 = smul.u32 2, %s54
    %p56 = scmp.lt.s32.totalorder %s55, 1
    %s57 = scalar_select %p56, %s55, 1
    %s58 = smul.addr %s57, 8
    %s59 = scalar_lea.vmem %s0, %s58
    %s60 = sadd.s32 0, 0
    %p61 = scmp.lt.s32.totalorder %s60, 0
    %s62 = scalar_select %p61, %s60, 0
    %s63 = smul.u32 2, %s62
    %s64 = sadd.s32 0, 0
    %p65 = scmp.lt.s32.totalorder %s64, 0
    %s66 = scalar_select %p65, %s64, 0
    %s67 = smul.u32 2, %s66
    %p68 = scmp.lt.s32.totalorder %s67, 1
    %s69 = scalar_select %p68, %s67, 1
    %s70 = smul.addr %s69, 8
    %s71 = scalar_lea.vmem %s1, %s70
    %s72 = sadd.s32 0, 0
    %p73 = scmp.lt.s32.totalorder %s72, 0
    %s74 = scalar_select %p73, %s72, 0
    %s75 = smul.u32 2, %s74
    %p76 = scmp.eq.s32.totalorder 0, 0
    // Predicated region
    $region10: #{tpu_custom_call.1} parent=1 // pred_check
      %p77 = pneg %p76
    $region11: #{tpu_custom_call.1} parent=1 // pred_check_branch
      %79 = sbr.rel (%p77) target = $region13
    $region12: #{tpu_custom_call.1} parent=1 // pred_region
      %vm80 = vcmask 7168
      %81 = vst.msk [vmem:[#allocation2] sm:$0xff] %vm80, 0.0
      %82 = vst.msk [vmem:[#allocation2 + $0x8] sm:$0xff] %vm80, 0.0
    $region13: #{tpu_custom_call.1} parent=1 // pred_fallthru
      _
    %v83 = vld [vmem:[%s59] sm:$0xff]
    %v84 = vld [vmem:[%s59 + $0x8] sm:$0xff]
    %85 = vmax.xlane.f32.xlu0 %v83
    %v86 = vpop.xlane.xlu0 %85
    %87 = vmax.xlane.f32.xlu0 %v84
    %v88 = vpop.xlane.xlu0 %87
    %v89 = vsub.f32 %v83, %v86
    %v90 = vsub.f32 %v84, %v88
    %v91 = vmul.f32 %v89, 1.442695
    %v92 = vpow.pop %v91
    %v93 = vmul.f32 %v90, 1.442695
    %v94 = vpow.pop %v93
    %95 = vadd.xlane.f32.xlu0 %v92
    %v96 = vpop.xlane.xlu0 %95
    %97 = vadd.xlane.f32.xlu0 %v94
    %v98 = vpop.xlane.xlu0 %97
    %v99 = vlog2.pop %v96
    %v100 = vmul.f32 %v99, 0.6931472
    %v101 = vlog2.pop %v98
    %v102 = vmul.f32 %v101, 0.6931472
    %v103 = vld [vmem:[%s71] sm:$0xff]
    %v104 = vld [vmem:[%s71 + $0x8] sm:$0xff]
    %v105 = vsub.f32 %v103, %v86
    %v106 = vsub.f32 %v104, %v88
    %107 = vadd.xlane.f32.xlu0 %v89
    %v108 = vpop.xlane.xlu0 %107
    %109 = vadd.xlane.f32.xlu0 %v90
    %v110 = vpop.xlane.xlu0 %109
    %v111 = vmul.f32 %v108, 0.0007874016
    %v112 = vmul.f32 %v110, 0.0007874016
    %v113 = vsub.f32 %v100, %v111
    %v114 = vsub.f32 %v102, %v112
    %v115 = vmul.f32 %v105, 0.8992126
    %v116 = vmul.f32 %v106, 0.8992126
    %v117 = vsub.f32 %v113, %v115
    %v118 = vsub.f32 %v114, %v116
    %s119 = sadd.s32 0, 0
    %s120 = smul.u32 %s119, 16
    %v121 = vlaneseq
    %v122 = vshrl.u32 %v121, 7
    %v123 = vadd.s32 %v122, 8
    %v124 = vstv %s120
    %v125 = vadd.s32 %v124, %v122
    %v126 = vadd.s32 %v124, %v123
    %vm127 = vcmp.lt.s32.totalorder %v125, 16
    %vm128 = vcmp.lt.s32.totalorder %v126, 16
    %v129 = vld [vmem:[#allocation2] sm:$0xff]
    %v130 = vld [vmem:[#allocation2 + $0x8] sm:$0xff]
    %v131 = vsel %vm127, %v117, 0.0
    %v132 = vsel %vm128, %v118, 0.0
    %v133 = vadd.f32 %v129, %v131
    %v134 = vadd.f32 %v130, %v132
    %vm135 = vcmask 7168
    %136 = vst.msk [vmem:[#allocation2] sm:$0xff] %vm135, %v133
    %137 = vst.msk [vmem:[#allocation2 + $0x8] sm:$0xff] %vm135, %v134
    // Predicated region
    $region14: #{tpu_custom_call.1} parent=1 // pred_check
      %p138 = pneg %p76
    $region15: #{tpu_custom_call.1} parent=1 // pred_check_branch
      %140 = sbr.rel (%p138) target = $region17
    $region16: #{tpu_custom_call.1} parent=1 // pred_region
      %v141 = vld [vmem:[#allocation2] sm:$0xff]
      %v142 = vld [vmem:[#allocation2 + $0x8] sm:$0xff]
      %v143 = vsel %vm135, %v141, 0.0
      %v144 = vsel %vm135, %v142, 0.0
      %v145 = vadd.f32 %v143, %v144
      %146 = vadd.xlane.f32.xlu0 %v145
      %v147 = vpop.xlane.xlu0 %146
      %v148 = vrot.slane %v147, 4
      %v149 = vadd.f32 %v147, %v148
      %v150 = vrot.slane %v149, 2
      %v151 = vadd.f32 %v149, %v150
      %v152 = vrot.slane %v151, 1
      %v153 = vadd.f32 %v151, %v152
      %s154 = vtos %v153
      %v155 = vstv %s154
      %156 = vst [vmem:[#allocation3] sm:$0xff] %v155
    $region17: #{tpu_custom_call.1} parent=1 // pred_fallthru
      _
    // Predicated region
    $region18: #{tpu_custom_call.1} parent=1 // pred_check
      _
    $region19: #{tpu_custom_call.1} parent=1 // pred_check_branch
      %158 = sbr.rel (0) target = $region21
    $region20: #{tpu_custom_call.1} parent=1 // pred_region
      %s160 = ssub.s32 128, 128
      %161 = vsyncadd [#allocation4], %s160
      %s163 = sshll.u32 [#allocation3], 4
      %s164 = int_to_ptr.vmem [resolvable:$true] %s163
      %166 = dma.vmem_to_hbm [thread:$0]  %s164, 128, %s2, [#allocation4]
    $region21: #{tpu_custom_call.1} parent=1 // pred_fallthru
      _
    // Predicated region
    $region22: #{tpu_custom_call.1} parent=1 // pred_check
      _
    $region23: #{tpu_custom_call.1} parent=1 // pred_check_branch
      %168 = sbr.rel (0) target = $region25
    $region24: #{tpu_custom_call.1} parent=1 // pred_region
      %169 = dma.done [#allocation4], 128
    $region25: #{tpu_custom_call.1} parent=1 // pred_fallthru
      _
    %170 = vsyncpa [#allocation4], 1

</llo_original>
